<compile_context>
chip_gen: v7x
topology: tpu7x:2x2x1
jax: 0.10.0
libtpu: 0.0.40
codegen_flags: <defaults>
</compile_context>

<pallas_src>
import jax
import jax.numpy as jnp
import numpy as np
from jax.experimental import pallas as pl
from jax.experimental.pallas import tpu as pltpu


STATE_DIM = 148
ACTION_DIM = 6
HIDDEN = 10
HPAD = 128                    # lane-width padding for hidden / action features
DEFAULT_BLOCK_BATCH = 2048    # max batch rows per grid step (VMEM-safe on v5e/v6e/v7x)
MIN_TILE = 8                  # sublane granularity for the batch axis
MASK_NEG = -1e30              # finite sentinel baked into b4 padded lanes


def _cdiv(a, b):
    return (a + b - 1) // b


def _round_up(x, m):
    return _cdiv(x, m) * m


# --------------------------------------------------------------------------- #
# Kernel
# --------------------------------------------------------------------------- #
def _policy_kernel(x_ref, w1_ref, wrest_ref, b_ref, out_ref):
    """One batch tile of the MLP + softmax.

    x_ref:     [TB, 148]      bf16
    w1_ref:    [148, 128]     bf16   (W1 padded 10 -> 128 output columns)
    wrest_ref: [3, 128, 128]  bf16   (W2, W3, W4 zero-padded to 128x128)
    b_ref:     [4, 128]       f32    (b1..b4 padded; b4 padded lanes = -1e30)
    out_ref:   [TB, 6]        f32    (action probabilities)
    """
    x = x_ref[...]                                           # [TB, 148] bf16
    b = b_ref[...]                                           # [4, 128]  f32

    # Layer 1: bf16 MXU matmul, f32 accumulation, dense 128-lane result.
    h = jnp.dot(x, w1_ref[...], preferred_element_type=jnp.float32) + b[0:1]
    h = jnp.maximum(h, 0.0)                                  # [TB, 128] f32

    # Layers 2-3 (Linear + ReLU) and 4 (scores): bf16 MXU, f32 accumulate.
    h = jnp.dot(h.astype(jnp.bfloat16), wrest_ref[0],
                preferred_element_type=jnp.float32) + b[1:2]
    h = jnp.maximum(h, 0.0)
    h = jnp.dot(h.astype(jnp.bfloat16), wrest_ref[1],
                preferred_element_type=jnp.float32) + b[2:3]
    h = jnp.maximum(h, 0.0)
    scores = jnp.dot(h.astype(jnp.bfloat16), wrest_ref[2],
                     preferred_element_type=jnp.float32) + b[3:4]
    # Padded action lanes carry -1e30 via b4, so exp underflows to exactly 0
    # and the row max always comes from a valid lane (no iota/select needed).

    m = jnp.max(scores, axis=1, keepdims=True)
    e = jnp.exp(scores - m)
    denom = jnp.sum(e, axis=1, keepdims=True)
    probs = e * pl.reciprocal(denom, approx=False)           # exact: rows sum to 1

    out_ref[...] = probs[:, :ACTION_DIM]


# --------------------------------------------------------------------------- #
# Wrapper
# --------------------------------------------------------------------------- #
def keydoor_policy_probs(x, packed_params, *, block_batch=DEFAULT_BLOCK_BATCH):
    """Returns action probabilities [batch, ACTION_DIM] (f32)."""
    w1p, w_rest, b_all = packed_params
    batch = x.shape[0]

    # Cast x upstream of the kernel: halves the dominant HBM read stream and
    # is numerically identical (layer 1 truncates to bf16 anyway).
    x = x.astype(jnp.bfloat16)

    # Tiling: keep tiles <= block_batch, use >= 2 tiles when the batch is big
    # enough (feeds both v7x TensorCores), and size the tile from
    # ceil(batch / n_tiles) so padding waste stays < MIN_TILE rows per tile.
    n_tiles = max(1, _cdiv(batch, block_batch))
    if n_tiles < 2 and batch >= 2 * MIN_TILE:
        n_tiles = 2
    tb = _round_up(_cdiv(batch, n_tiles), MIN_TILE)
    b_pad = n_tiles * tb
    if b_pad != batch:
        x = jnp.pad(x, ((0, b_pad - batch), (0, 0)))

    out = pl.pallas_call(
        _policy_kernel,
        out_shape=jax.ShapeDtypeStruct((b_pad, ACTION_DIM), jnp.float32),
        grid=(n_tiles,),
        in_specs=[
            pl.BlockSpec((tb, STATE_DIM), lambda i: (i, 0)),      # x: tiled on batch
            pl.BlockSpec((STATE_DIM, HPAD), lambda i: (0, 0)),    # W1: VMEM-resident
            pl.BlockSpec((3, HPAD, HPAD), lambda i: (0, 0, 0)),   # W2/W3/W4 slab
            pl.BlockSpec((4, HPAD), lambda i: (0, 0)),            # biases slab
        ],
        out_specs=pl.BlockSpec((tb, ACTION_DIM), lambda i: (i, 0)),
        compiler_params=pltpu.CompilerParams(
            dimension_semantics=("parallel",),                    # megacore on v7x
        ),
    )(x, w1p, w_rest, b_all)

    if b_pad != batch:
        out = out[:batch]
    return out


def keydoor_policy_forward(x, packed_params, key, get_action=True):
    """Mirrors KeyDoorPolicyNetwork.forward."""
    probs = keydoor_policy_probs(x, packed_params)
    if not get_action:
        return probs
    # TODO(synk): reference samples with host-side np.random.multinomial; here we
    # sample the same categorical distribution with jax.random.categorical.
    logits = jnp.log(jnp.maximum(probs, 1e-30))
    actions = jax.random.categorical(key, logits, axis=1).astype(jnp.uint8)[:, None]
    return probs, actions


# --------------------------------------------------------------------------- #
# Parameter construction / packing
# --------------------------------------------------------------------------- #
def init_params(key):
    """Logical parameters: W_i [in, out] f32 (transposed vs. PyTorch), b_i [out]."""
    dims = [(STATE_DIM, HIDDEN), (HIDDEN, HIDDEN), (HIDDEN, HIDDEN), (HIDDEN, ACTION_DIM)]
    params = []
    for fan_in, fan_out in dims:
        key, kw, kb = jax.random.split(key, 3)
        bound = 1.0 / np.sqrt(fan_in)           # PyTorch nn.Linear default scale
        w = jax.random.uniform(kw, (fan_in, fan_out), jnp.float32, -bound, bound)
        b = jax.random.uniform(kb, (fan_out,), jnp.float32, -bound, bound)
        params += [w, b]
    return tuple(params)


def pack_params(params):
    """Zero-pad weights/biases to 128 lanes and pack into 3 kernel inputs."""
    w1, b1, w2, b2, w3, b3, w4, b4 = params

    w1p = jnp.zeros((STATE_DIM, HPAD), jnp.float32).at[:, :HIDDEN].set(w1)
    w1p = w1p.astype(jnp.bfloat16)

    def pad_sq(w, n_in, n_out):
        return jnp.zeros((HPAD, HPAD), jnp.float32).at[:n_in, :n_out].set(w)

    w_rest = jnp.stack([
        pad_sq(w2, HIDDEN, HIDDEN),
        pad_sq(w3, HIDDEN, HIDDEN),
        pad_sq(w4, HIDDEN, ACTION_DIM),
    ]).astype(jnp.bfloat16)

    # Bias slab (f32).  The padded lanes of b4 carry a finite -1e30 sentinel so
    # the kernel's softmax needs no explicit lane mask.
    b_all = jnp.zeros((4, HPAD), jnp.float32)
    b_all = (b_all.at[0, :HIDDEN].set(b1)
                  .at[1, :HIDDEN].set(b2)
                  .at[2, :HIDDEN].set(b3)
                  .at[3, :].set(MASK_NEG)
                  .at[3, :ACTION_DIM].set(b4))
    return w1p, w_rest, b_all


# --------------------------------------------------------------------------- #
# References for correctness checks
# --------------------------------------------------------------------------- #
def _reference_probs_packed(x, packed_params):
    """Pure-JAX reference using the exact packed (bf16) parameters / dtypes."""
    w1p, w_rest, b_all = packed_params
    h = jnp.dot(x.astype(jnp.bfloat16), w1p,
                preferred_element_type=jnp.float32) + b_all[0:1]
    h = jnp.maximum(h, 0.0)
    for i in range(3):
        h = jnp.dot(h.astype(jnp.bfloat16), w_rest[i],
                    preferred_element_type=jnp.float32) + b_all[i + 1:i + 2]
        if i < 2:
            h = jnp.maximum(h, 0.0)
    return jax.nn.softmax(h[:, :ACTION_DIM], axis=1)


def _reference_probs_f32(x, params):
    """Full-f32 reference with PyTorch semantics."""
    w1, b1, w2, b2, w3, b3, w4, b4 = params
    hp = jax.lax.Precision.HIGHEST
    h = jnp.maximum(jnp.dot(x, w1, precision=hp) + b1, 0.0)
    h = jnp.maximum(jnp.dot(h, w2, precision=hp) + b2, 0.0)
    h = jnp.maximum(jnp.dot(h, w3, precision=hp) + b3, 0.0)
    s = jnp.dot(h, w4, precision=hp) + b4
    return jax.nn.softmax(s, axis=1)


def _check(x, params, packed):
    probs = jax.block_until_ready(keydoor_policy_probs(x, packed))
    # Tight check: same packed bf16 math in plain JAX.
    ref_matched = jax.block_until_ready(_reference_probs_packed(x, packed))
    np.testing.assert_allclose(np.asarray(probs), np.asarray(ref_matched),
                               rtol=1e-4, atol=1e-4)
    # Loose check: full-f32 PyTorch-semantics reference (bf16 tolerance).
    ref_f32 = jax.block_until_ready(_reference_probs_f32(x, params))
    np.testing.assert_allclose(np.asarray(probs), np.asarray(ref_f32),
                               rtol=5e-2, atol=5e-3)
    np.testing.assert_allclose(np.asarray(probs).sum(axis=1), 1.0,
                               rtol=1e-5, atol=1e-5)
    return probs


# --------------------------------------------------------------------------- #
if __name__ == "__main__":
    key = jax.random.PRNGKey(0)
    key, k_params, k_x, k_x2, k_sample = jax.random.split(key, 5)

    params = init_params(k_params)
    packed = pack_params(params)

    # Small single-tile case (batch=8), including forward() with sampling.
    batch = 8
    x = jax.random.normal(k_x, (batch, STATE_DIM), jnp.float32)
    probs, actions = keydoor_policy_forward(x, packed, k_sample, get_action=True)
    probs = jax.block_until_ready(probs)
    actions = jax.block_until_ready(actions)
    assert probs.shape == (batch, ACTION_DIM)
    assert actions.shape == (batch, 1) and actions.dtype == jnp.uint8
    _check(x, params, packed)

    # Multi-tile case (batch=24 -> 2 grid tiles with row padding).
    x2 = jax.random.normal(k_x2, (24, STATE_DIM), jnp.float32)
    probs2 = _check(x2, params, packed)
    assert probs2.shape == (24, ACTION_DIM)

    print("KERNEL_OK")
</pallas_src>

<mosaic_0001>
module attributes {stable_mosaic.version = 11 : i64} {
  func.func @_policy_kernel(%arg0: i32, %arg1: memref<8x148xbf16, #tpu.memory_space<vmem>>, %arg2: memref<148x128xbf16, #tpu.memory_space<vmem>>, %arg3: memref<3x128x128xbf16, #tpu.memory_space<vmem>>, %arg4: memref<4x128xf32, #tpu.memory_space<vmem>>, %arg5: memref<8x6xf32, #tpu.memory_space<vmem>>) attributes {dimension_semantics = [#tpu.dimension_semantics<parallel>], iteration_bounds = array<i64: 1>, scalar_prefetch = 0 : i64, scratch_operands = 0 : i64, tpu.core_type = #tpu.core_type<tc>, window_params = [{transform_indices = @transform_0, window_bounds = array<i64: 8, 148>}, {pipeline_mode = #tpu.pipeline_mode<synchronous>, transform_indices = @transform_1, window_bounds = array<i64: 148, 128>}, {pipeline_mode = #tpu.pipeline_mode<synchronous>, transform_indices = @transform_2, window_bounds = array<i64: 3, 128, 128>}, {pipeline_mode = #tpu.pipeline_mode<synchronous>, transform_indices = @transform_3, window_bounds = array<i64: 4, 128>}, {transform_indices = @transform_4, window_bounds = array<i64: 8, 6>}]} {
    %c0 = arith.constant 0 : index
    %c0_0 = arith.constant 0 : index
    %0 = vector.load %arg1[%c0, %c0_0] : memref<8x148xbf16, #tpu.memory_space<vmem>>, vector<8x148xbf16>
    %c0_1 = arith.constant 0 : index
    %c0_2 = arith.constant 0 : index
    %1 = vector.load %arg4[%c0_1, %c0_2] : memref<4x128xf32, #tpu.memory_space<vmem>>, vector<4x128xf32>
    %c0_3 = arith.constant 0 : index
    %c0_4 = arith.constant 0 : index
    %2 = vector.load %arg2[%c0_3, %c0_4] : memref<148x128xbf16, #tpu.memory_space<vmem>>, vector<148x128xbf16>
    %cst = arith.constant dense<0.000000e+00> : vector<8x128xf32>
    %3 = tpu.matmul %0, %2, %cst {dimension_numbers = #tpu.dot_dimension_numbers<[1], [0], [0], [1], [0, 0, 1, 1], [], []>} : vector<8x148xbf16>, vector<148x128xbf16>, vector<8x128xf32> -> vector<8x128xf32>
    %4 = vector.extract_strided_slice %1 {offsets = [0, 0], sizes = [1, 128], strides = [1, 1]} : vector<4x128xf32> to vector<1x128xf32>
    %5 = vector.broadcast %4 : vector<1x128xf32> to vector<8x128xf32>
    %6 = arith.addf %3, %5 : vector<8x128xf32>
    %cst_5 = arith.constant 0.000000e+00 : f32
    %7 = vector.broadcast %cst_5 : f32 to vector<8x128xf32>
    %8 = arith.maximumf %6, %7 : vector<8x128xf32>
    %9 = arith.truncf %8 : vector<8x128xf32> to vector<8x128xbf16>
    %c0_6 = arith.constant 0 : index
    %c0_7 = arith.constant 0 : index
    %c0_8 = arith.constant 0 : index
    %10 = vector.load %arg3[%c0_6, %c0_7, %c0_8] : memref<3x128x128xbf16, #tpu.memory_space<vmem>>, vector<1x128x128xbf16>
    %11 = vector.shape_cast %10 : vector<1x128x128xbf16> to vector<128x128xbf16>
    %cst_9 = arith.constant dense<0.000000e+00> : vector<8x128xf32>
    %12 = tpu.matmul %9, %11, %cst_9 {dimension_numbers = #tpu.dot_dimension_numbers<[1], [0], [0], [1], [0, 0, 1, 1], [], []>} : vector<8x128xbf16>, vector<128x128xbf16>, vector<8x128xf32> -> vector<8x128xf32>
    %13 = vector.extract_strided_slice %1 {offsets = [1, 0], sizes = [1, 128], strides = [1, 1]} : vector<4x128xf32> to vector<1x128xf32>
    %14 = vector.broadcast %13 : vector<1x128xf32> to vector<8x128xf32>
    %15 = arith.addf %12, %14 : vector<8x128xf32>
    %cst_10 = arith.constant 0.000000e+00 : f32
    %16 = vector.broadcast %cst_10 : f32 to vector<8x128xf32>
    %17 = arith.maximumf %15, %16 : vector<8x128xf32>
    %18 = arith.truncf %17 : vector<8x128xf32> to vector<8x128xbf16>
    %c1 = arith.constant 1 : index
    %c0_11 = arith.constant 0 : index
    %c0_12 = arith.constant 0 : index
    %19 = vector.load %arg3[%c1, %c0_11, %c0_12] : memref<3x128x128xbf16, #tpu.memory_space<vmem>>, vector<1x128x128xbf16>
    %20 = vector.shape_cast %19 : vector<1x128x128xbf16> to vector<128x128xbf16>
    %cst_13 = arith.constant dense<0.000000e+00> : vector<8x128xf32>
    %21 = tpu.matmul %18, %20, %cst_13 {dimension_numbers = #tpu.dot_dimension_numbers<[1], [0], [0], [1], [0, 0, 1, 1], [], []>} : vector<8x128xbf16>, vector<128x128xbf16>, vector<8x128xf32> -> vector<8x128xf32>
    %22 = vector.extract_strided_slice %1 {offsets = [2, 0], sizes = [1, 128], strides = [1, 1]} : vector<4x128xf32> to vector<1x128xf32>
    %23 = vector.broadcast %22 : vector<1x128xf32> to vector<8x128xf32>
    %24 = arith.addf %21, %23 : vector<8x128xf32>
    %cst_14 = arith.constant 0.000000e+00 : f32
    %25 = vector.broadcast %cst_14 : f32 to vector<8x128xf32>
    %26 = arith.maximumf %24, %25 : vector<8x128xf32>
    %27 = arith.truncf %26 : vector<8x128xf32> to vector<8x128xbf16>
    %c2 = arith.constant 2 : index
    %c0_15 = arith.constant 0 : index
    %c0_16 = arith.constant 0 : index
    %28 = vector.load %arg3[%c2, %c0_15, %c0_16] : memref<3x128x128xbf16, #tpu.memory_space<vmem>>, vector<1x128x128xbf16>
    %29 = vector.shape_cast %28 : vector<1x128x128xbf16> to vector<128x128xbf16>
    %cst_17 = arith.constant dense<0.000000e+00> : vector<8x128xf32>
    %30 = tpu.matmul %27, %29, %cst_17 {dimension_numbers = #tpu.dot_dimension_numbers<[1], [0], [0], [1], [0, 0, 1, 1], [], []>} : vector<8x128xbf16>, vector<128x128xbf16>, vector<8x128xf32> -> vector<8x128xf32>
    %31 = vector.extract_strided_slice %1 {offsets = [3, 0], sizes = [1, 128], strides = [1, 1]} : vector<4x128xf32> to vector<1x128xf32>
    %32 = vector.broadcast %31 : vector<1x128xf32> to vector<8x128xf32>
    %33 = arith.addf %30, %32 : vector<8x128xf32>
    %cst_18 = arith.constant dense<0xFF800000> : vector<8xf32>
    %34 = vector.multi_reduction <maximumf>, %33, %cst_18 [1] : vector<8x128xf32> to vector<8xf32>
    %35 = vector.shape_cast %34 : vector<8xf32> to vector<8x1xf32>
    %36 = vector.broadcast %35 : vector<8x1xf32> to vector<8x128xf32>
    %37 = arith.subf %33, %36 : vector<8x128xf32>
    %38 = math.exp %37 : vector<8x128xf32>
    %cst_19 = arith.constant dense<0.000000e+00> : vector<8xf32>
    %39 = vector.multi_reduction <add>, %38, %cst_19 [1] : vector<8x128xf32> to vector<8xf32>
    %40 = vector.shape_cast %39 : vector<8xf32> to vector<8x1xf32>
    %41 = tpu.reciprocal %40 : vector<8x1xf32> -> vector<8x1xf32>
    %42 = vector.broadcast %41 : vector<8x1xf32> to vector<8x128xf32>
    %43 = arith.mulf %38, %42 : vector<8x128xf32>
    %44 = vector.extract_strided_slice %43 {offsets = [0, 0], sizes = [8, 6], strides = [1, 1]} : vector<8x128xf32> to vector<8x6xf32>
    %c0_20 = arith.constant 0 : index
    %c0_21 = arith.constant 0 : index
    %45 = vector.load %arg5[%c0_20, %c0_21] : memref<8x6xf32, #tpu.memory_space<vmem>>, vector<8x6xf32>
    tpu.vector_store %arg5[%c0_20, %c0_21], %44 {strides = array<i32>} : memref<8x6xf32, #tpu.memory_space<vmem>>, vector<8x6xf32>,
    return
  }
  func.func @transform_0(%arg0: i32) -> (i32, i32) {
    %c0_i32 = arith.constant 0 : i32
    %c0_i32_0 = arith.constant 0 : i32
    return %arg0, %c0_i32 : i32, i32
  }
  func.func @transform_1(%arg0: i32) -> (i32, i32) {
    %c0_i32 = arith.constant 0 : i32
    %c0_i32_0 = arith.constant 0 : i32
    %c0_i32_1 = arith.constant 0 : i32
    return %c0_i32, %c0_i32_0 : i32, i32
  }
  func.func @transform_2(%arg0: i32) -> (i32, i32, i32) {
    %c0_i32 = arith.constant 0 : i32
    %c0_i32_0 = arith.constant 0 : i32
    %c0_i32_1 = arith.constant 0 : i32
    %c0_i32_2 = arith.constant 0 : i32
    return %c0_i32, %c0_i32_0, %c0_i32_1 : i32, i32, i32
  }
  func.func @transform_3(%arg0: i32) -> (i32, i32) {
    %c0_i32 = arith.constant 0 : i32
    %c0_i32_0 = arith.constant 0 : i32
    %c0_i32_1 = arith.constant 0 : i32
    return %c0_i32, %c0_i32_0 : i32, i32
  }
  func.func @transform_4(%arg0: i32) -> (i32, i32) {
    %c0_i32 = arith.constant 0 : i32
    %c0_i32_0 = arith.constant 0 : i32
    return %arg0, %c0_i32 : i32, i32
  }
}

</mosaic_0001>

<llo_original>
// kernel: tpu_custom_call.1
$region0: #{tpu_custom_call.1}
  #allocation0 [shape = 'u32[]', space=smem, size = 0x4, offset = 0x4, fixed_abs, tag = 'smem constant byte address 0x4 - core index']
  #allocation1 [shape = 'u32[144,128]{1,0:T(1,128)}', space=vmem, size = 0x12000, scoped, tag = 'internal scratch']
  %s0 = inlined_call_operand.hbm [shape: bf16[8,148], index: 0, kind: input, shape index: {}]
  %s1 = inlined_call_operand.hbm [shape: bf16[148,128], index: 1, kind: input, shape index: {}]
  %s2 = inlined_call_operand.hbm [shape: bf16[3,128,128], index: 2, kind: input, shape index: {}]
  %s3 = inlined_call_operand.vmem [shape: f32[4,128], index: 3, kind: input, shape index: {}]
  %s4 = inlined_call_operand.hbm [shape: f32[8,6], index: 4, kind: output, shape index: {}]
  %s5 = sld [smem:[#allocation0]]
  $region38: #{tpu_custom_call.1} parent=0
    _
  %s7 = ssub.s32 1, %s5
  %s8 = scalar_select 0, %s7, %s5
  $region1: #{tpu_custom_call.1} parent=0
    #allocation2 [shape = 'u8[4096]{0}', space=vmem, size = 0x1000, scoped, tag = 'input window, operand 0, single buffered']
    #allocation3 [shape = 's32[1]{0}', space=sflag, size = 0x4, scoped, tag = 'scoped memory for tpu_custom_call.1']
    #allocation4 [shape = 's32[1]{0}', space=sflag, size = 0x4, scoped, tag = 'scoped memory for tpu_custom_call.1']
    #allocation5 [shape = 'u8[38912]{0}', space=vmem, size = 0x9800, scoped, tag = 'input window, operand 1, single buffered']
    #allocation6 [shape = 's32[1]{0}', space=sflag, size = 0x4, scoped, tag = 'scoped memory for tpu_custom_call.1']
    #allocation7 [shape = 'u8[98304]{0}', space=vmem, size = 0x18000, scoped, tag = 'input window, operand 2, single buffered']
    #allocation8 [shape = 'u8[4096]{0}', space=vmem, size = 0x1000, scoped, tag = 'output window, operand 0, single buffered']
    %9 = vsyncpa [#allocation3], 0
    %10 = vsyncpa [#allocation6], 0
    %11 = vsyncpa [#allocation4], 0
    // Predicated region
    $region2: #{tpu_custom_call.1} parent=1 // pred_check
      _
    $region3: #{tpu_custom_call.1} parent=1 // pred_check_branch
      %13 = sbr.rel (0) target = $region5
    $region4: #{tpu_custom_call.1} parent=1 // pred_region
      %s15 = ssub.s32 128, 128
      %16 = vsyncadd [#allocation3], %s15
      %s18 = sshll.u32 [#allocation2], 4
      %s19 = int_to_ptr.vmem [resolvable:$true] %s18
      %21 = dma.hbm_to_vmem [thread:$0]  %s0, 128, %s19, [#allocation3]
    $region5: #{tpu_custom_call.1} parent=1 // pred_fallthru
      _
    // Predicated region
    $region6: #{tpu_custom_call.1} parent=1 // pred_check
      _
    $region7: #{tpu_custom_call.1} parent=1 // pred_check_branch
      %23 = sbr.rel (0) target = $region9
    $region8: #{tpu_custom_call.1} parent=1 // pred_region
      %s25 = ssub.s32 1216, 1216
      %26 = vsyncadd [#allocation6], %s25
      %s27 = sshll.u32 [#allocation5], 4
      %s28 = int_to_ptr.vmem [resolvable:$true] %s27
      %33 = dma.hbm_to_vmem [thread:$0]  %s1, 1216, %s28, [#allocation6], 64, 64, 4
    $region9: #{tpu_custom_call.1} parent=1 // pred_fallthru
      _
    // Predicated region
    $region10: #{tpu_custom_call.1} parent=1 // pred_check
      _
    $region11: #{tpu_custom_call.1} parent=1 // pred_check_branch
      %35 = sbr.rel (0) target = $region13
    $region12: #{tpu_custom_call.1} parent=1 // pred_region
      %s37 = ssub.s32 3072, 3072
      %38 = vsyncadd [#allocation6], %s37
      %s39 = sshll.u32 [#allocation7], 4
      %s40 = int_to_ptr.vmem [resolvable:$true] %s39
      %45 = dma.hbm_to_vmem [thread:$0]  %s2, 3072, %s40, [#allocation6], 64, 64, 4
    $region13: #{tpu_custom_call.1} parent=1 // pred_fallthru
      _
    // Predicated region
    $region14: #{tpu_custom_call.1} parent=1 // pred_check
      _
    $region15: #{tpu_custom_call.1} parent=1 // pred_check_branch
      %47 = sbr.rel (0) target = $region17
    $region16: #{tpu_custom_call.1} parent=1 // pred_region
      _
    $region17: #{tpu_custom_call.1} parent=1 // pred_fallthru
      _
    // Predicated region
    $region18: #{tpu_custom_call.1} parent=1 // pred_check
      _
    $region19: #{tpu_custom_call.1} parent=1 // pred_check_branch
      %49 = sbr.rel (0) target = $region21
    $region20: #{tpu_custom_call.1} parent=1 // pred_region
      %50 = dma.done [#allocation3], 128
    $region21: #{tpu_custom_call.1} parent=1 // pred_fallthru
      _
    // Predicated region
    $region22: #{tpu_custom_call.1} parent=1 // pred_check
      _
    $region23: #{tpu_custom_call.1} parent=1 // pred_check_branch
      %52 = sbr.rel (0) target = $region25
    $region24: #{tpu_custom_call.1} parent=1 // pred_region
      %53 = dma.done [#allocation6], 1216
    $region25: #{tpu_custom_call.1} parent=1 // pred_fallthru
      _
    // Predicated region
    $region26: #{tpu_custom_call.1} parent=1 // pred_check
      _
    $region27: #{tpu_custom_call.1} parent=1 // pred_check_branch
      %55 = sbr.rel (0) target = $region29
    $region28: #{tpu_custom_call.1} parent=1 // pred_region
      %56 = dma.done [#allocation6], 3072
    $region29: #{tpu_custom_call.1} parent=1 // pred_fallthru
      _
    %v58 = vld [vmem:[#allocation2] sm:$0xff]
    %v59 = vld [vmem:[%s3] sm:$0xf]
    %v60 = vld [vmem:[#allocation5] sm:$0xf]
    %v61 = vld [vmem:[#allocation5 + $0x4] sm:$0xf]
    %v62 = vld [vmem:[#allocation5 + $0x8] sm:$0xf]
    %v63 = vld [vmem:[#allocation5 + $0xc] sm:$0xf]
    %v64 = vld [vmem:[#allocation5 + $0x10] sm:$0xf]
    %v65 = vld [vmem:[#allocation5 + $0x14] sm:$0xf]
    %v66 = vld [vmem:[#allocation5 + $0x18] sm:$0xf]
    %v67 = vld [vmem:[#allocation5 + $0x1c] sm:$0xf]
    %v68 = vld [vmem:[#allocation5 + $0x20] sm:$0xf]
    %v69 = vld [vmem:[#allocation5 + $0x24] sm:$0xf]
    %v70 = vld [vmem:[#allocation5 + $0x28] sm:$0xf]
    %v71 = vld [vmem:[#allocation5 + $0x2c] sm:$0xf]
    %v72 = vld [vmem:[#allocation5 + $0x30] sm:$0xf]
    %v73 = vld [vmem:[#allocation5 + $0x34] sm:$0xf]
    %v74 = vld [vmem:[#allocation5 + $0x38] sm:$0xf]
    %v75 = vld [vmem:[#allocation5 + $0x3c] sm:$0xf]
    %v76 = vld [vmem:[#allocation5 + $0x40] sm:$0xf]
    %v77 = vld [vmem:[#allocation5 + $0x44] sm:$0xf]
    %v78 = vld [vmem:[#allocation5 + $0x48] sm:$0x3]
    %v79 = vlaneseq
    %v80 = vshrl.u32 %v79, 7
    %v81 = vsub.s32 0, %v80
    %v82 = vrot.slane %v59, %v81
    %v84 = vunpack.c.l.b16 %v58
    %v85 = vunpack.c.h.b16 %v58
    %v86 = vpack.c.b16 %v84, %v84
    %v87 = vpack.c.b16 %v85, %v85
    %v108 = vunpack.c.l.b16 %v60
    %v109 = vunpack.c.l.b16 %v61
    %v110 = vunpack.c.l.b16 %v62
    %v111 = vunpack.c.l.b16 %v63
    %v112 = vunpack.c.l.b16 %v64
    %v113 = vunpack.c.l.b16 %v65
    %v114 = vunpack.c.l.b16 %v66
    %v115 = vunpack.c.l.b16 %v67
    %v116 = vunpack.c.l.b16 %v68
    %v117 = vunpack.c.l.b16 %v69
    %v118 = vunpack.c.l.b16 %v70
    %v119 = vunpack.c.l.b16 %v71
    %v120 = vunpack.c.l.b16 %v72
    %v121 = vunpack.c.l.b16 %v73
    %v122 = vunpack.c.l.b16 %v74
    %v123 = vunpack.c.l.b16 %v75
    %v124 = vunpack.c.l.b16 %v76
    %v125 = vunpack.c.l.b16 %v77
    %v126 = vunpack.c.l.b16 %v78
    %v127 = vpack.c.b16 %v109, %v108
    %v128 = vpack.c.b16 %v111, %v110
    %v129 = vpack.c.b16 %v113, %v112
    %v130 = vpack.c.b16 %v115, %v114
    %v131 = vpack.c.b16 %v117, %v116
    %v132 = vpack.c.b16 %v119, %v118
    %v133 = vpack.c.b16 %v121, %v120
    %v134 = vpack.c.b16 %v123, %v122
    %v135 = vpack.c.b16 %v125, %v124
    %v136 = vpack.c.b16 %v126, %v126
    %vm146 = vcmask 162816
    %v148 = vsel %vm146, %v87, 0
    %vm150 = vcmask 1041408
    %v152 = vsel %vm150, %v136, 0
    %154 = vmatprep.subr.bf16.mxu0 0
    %155 = vmatpush1.bf16.msra.mxu0 %v127
    %156 = vmatprep.subr.bf16.mxu0 0
    %157 = vmatpush1.bf16.msra.mxu0 %v128
    %158 = vmatprep.subr.bf16.mxu0 0
    %159 = vmatpush1.bf16.msra.mxu0 %v129
    %160 = vmatprep.subr.bf16.mxu0 0
    %161 = vmatpush1.bf16.msra.mxu0 %v130
    %162 = vmatprep.subr.bf16.mxu0 0
    %163 = vmatpush1.bf16.msra.mxu0 %v131
    %164 = vmatprep.subr.bf16.mxu0 0
    %165 = vmatpush1.bf16.msra.mxu0 %v132
    %166 = vmatprep.subr.bf16.mxu0 0
    %167 = vmatpush1.bf16.msra.mxu0 %v133
    %168 = vmatprep.subr.bf16.mxu0 0
    %169 = vmatpush1.bf16.msra.mxu0 %v134
    %170 = vmatprep.subr.bf16.mxu0 0
    %171 = vmatpush1.bf16.msra.mxu0 %v135
    %172 = vmatprep.subr.bf16.mxu0 0
    %173 = vmatpush1.bf16.msra.mxu0 %v152
    %174 = vmatprep.subr.bf16.mxu0 0
    %175 = vmatpush1.bf16.msra.mxu0 0
    %176 = vmatprep.subr.bf16.mxu0 0
    %177 = vmatpush1.bf16.msra.mxu0 0
    %178 = vmatprep.subr.bf16.mxu0 0
    %179 = vmatpush1.bf16.msra.mxu0 0
    %180 = vmatprep.subr.bf16.mxu0 0
    %181 = vmatpush1.bf16.msra.mxu0 0
    %182 = vmatprep.subr.bf16.mxu0 0
    %183 = vmatpush1.bf16.msra.mxu0 0
    %184 = vmatprep.subr.bf16.mxu0 0
    %185 = vmatpush1.bf16.msra.mxu0 0
    %186 = vmatprep.mubr.bf16.mxu0 %v148
    %187 = vmatmul.mubr.bf16.gmra.mrb[0].mxu0 %v86
    %v188 = vpop.f32.mrb[0].mxu0
    %v189 = vadd.f32 %v82, %v188
    %v190 = vpop.f32.mrb[0].mxu0
    %v191 = vpop.f32.mrb[0].mxu0
    %v192 = vpop.f32.mrb[0].mxu0
    %193 = vdwg.mxu0
    %v194 = vmax.f32 %v189, 0.0
    %v195 = vpack.c.bf16 %v194, %v194
    %v196 = vld [vmem:[#allocation7] sm:$0xf]
    %v197 = vld [vmem:[#allocation7 + $0x4] sm:$0xf]
    %v198 = vld [vmem:[#allocation7 + $0x8] sm:$0xf]
    %v199 = vld [vmem:[#allocation7 + $0xc] sm:$0xf]
    %v200 = vld [vmem:[#allocation7 + $0x10] sm:$0xf]
    %v201 = vld [vmem:[#allocation7 + $0x14] sm:$0xf]
    %v202 = vld [vmem:[#allocation7 + $0x18] sm:$0xf]
    %v203 = vld [vmem:[#allocation7 + $0x1c] sm:$0xf]
    %v204 = vld [vmem:[#allocation7 + $0x20] sm:$0xf]
    %v205 = vld [vmem:[#allocation7 + $0x24] sm:$0xf]
    %v206 = vld [vmem:[#allocation7 + $0x28] sm:$0xf]
    %v207 = vld [vmem:[#allocation7 + $0x2c] sm:$0xf]
    %v208 = vld [vmem:[#allocation7 + $0x30] sm:$0xf]
    %v209 = vld [vmem:[#allocation7 + $0x34] sm:$0xf]
    %v210 = vld [vmem:[#allocation7 + $0x38] sm:$0xf]
    %v211 = vld [vmem:[#allocation7 + $0x3c] sm:$0xf]
    %v212 = vlaneseq
    %v213 = vshrl.u32 %v212, 7
    %v214 = vsub.s32 1, %v213
    %v215 = vrot.slane %v59, %v214
    %v232 = vunpack.c.l.b16 %v196
    %v233 = vunpack.c.l.b16 %v197
    %v234 = vunpack.c.l.b16 %v198
    %v235 = vunpack.c.l.b16 %v199
    %v236 = vunpack.c.l.b16 %v200
    %v237 = vunpack.c.l.b16 %v201
    %v238 = vunpack.c.l.b16 %v202
    %v239 = vunpack.c.l.b16 %v203
    %v240 = vunpack.c.l.b16 %v204
    %v241 = vunpack.c.l.b16 %v205
    %v242 = vunpack.c.l.b16 %v206
    %v243 = vunpack.c.l.b16 %v207
    %v244 = vunpack.c.l.b16 %v208
    %v245 = vunpack.c.l.b16 %v209
    %v246 = vunpack.c.l.b16 %v210
    %v247 = vunpack.c.l.b16 %v211
    %v248 = vpack.c.b16 %v233, %v232
    %v249 = vpack.c.b16 %v235, %v234
    %v250 = vpack.c.b16 %v237, %v236
    %v251 = vpack.c.b16 %v239, %v238
    %v252 = vpack.c.b16 %v241, %v240
    %v253 = vpack.c.b16 %v243, %v242
    %v254 = vpack.c.b16 %v245, %v244
    %v255 = vpack.c.b16 %v247, %v246
    %264 = vmatprep.subr.bf16.mxu0 0
    %265 = vmatpush1.bf16.msra.mxu0 %v248
    %266 = vmatprep.subr.bf16.mxu0 0
    %267 = vmatpush1.bf16.msra.mxu0 %v249
    %268 = vmatprep.subr.bf16.mxu0 0
    %269 = vmatpush1.bf16.msra.mxu0 %v250
    %270 = vmatprep.subr.bf16.mxu0 0
    %271 = vmatpush1.bf16.msra.mxu0 %v251
    %272 = vmatprep.subr.bf16.mxu0 0
    %273 = vmatpush1.bf16.msra.mxu0 %v252
    %274 = vmatprep.subr.bf16.mxu0 0
    %275 = vmatpush1.bf16.msra.mxu0 %v253
    %276 = vmatprep.subr.bf16.mxu0 0
    %277 = vmatpush1.bf16.msra.mxu0 %v254
    %278 = vmatprep.subr.bf16.mxu0 0
    %279 = vmatpush1.bf16.msra.mxu0 %v255
    %280 = vmatprep.subr.bf16.mxu0 0
    %281 = vmatpush1.bf16.msra.mxu0 0
    %282 = vmatprep.subr.bf16.mxu0 0
    %283 = vmatpush1.bf16.msra.mxu0 0
    %284 = vmatprep.subr.bf16.mxu0 0
    %285 = vmatpush1.bf16.msra.mxu0 0
    %286 = vmatprep.subr.bf16.mxu0 0
    %287 = vmatpush1.bf16.msra.mxu0 0
    %288 = vmatprep.subr.bf16.mxu0 0
    %289 = vmatpush1.bf16.msra.mxu0 0
    %290 = vmatprep.subr.bf16.mxu0 0
    %291 = vmatpush1.bf16.msra.mxu0 0
    %292 = vmatprep.subr.bf16.mxu0 0
    %293 = vmatpush1.bf16.msra.mxu0 0
    %294 = vmatprep.subr.bf16.mxu0 0
    %295 = vmatpush1.bf16.msra.mxu0 0
    %296 = vmatprep.mubr.bf16.mxu0 0
    %297 = vmatmul.mubr.bf16.gmra.mrb[0].mxu0 %v195
    %v298 = vpop.f32.mrb[0].mxu0
    %v299 = vadd.f32 %v215, %v298
    %v300 = vpop.f32.mrb[0].mxu0
    %v301 = vpop.f32.mrb[0].mxu0
    %v302 = vpop.f32.mrb[0].mxu0
    %303 = vdwg.mxu0
    %v304 = vmax.f32 %v299, 0.0
    %v305 = vpack.c.bf16 %v304, %v304
    %s306 = scalar_lea.vmem [#allocation7], 64
    %v307 = vld [vmem:[%s306] sm:$0xf]
    %v308 = vld [vmem:[%s306 + $0x4] sm:$0xf]
    %v309 = vld [vmem:[%s306 + $0x8] sm:$0xf]
    %v310 = vld [vmem:[%s306 + $0xc] sm:$0xf]
    %v311 = vld [vmem:[%s306 + $0x10] sm:$0xf]
    %v312 = vld [vmem:[%s306 + $0x14] sm:$0xf]
    %v313 = vld [vmem:[%s306 + $0x18] sm:$0xf]
    %v314 = vld [vmem:[%s306 + $0x1c] sm:$0xf]
    %v315 = vld [vmem:[%s306 + $0x20] sm:$0xf]
    %v316 = vld [vmem:[%s306 + $0x24] sm:$0xf]
    %v317 = vld [vmem:[%s306 + $0x28] sm:$0xf]
    %v318 = vld [vmem:[%s306 + $0x2c] sm:$0xf]
    %v319 = vld [vmem:[%s306 + $0x30] sm:$0xf]
    %v320 = vld [vmem:[%s306 + $0x34] sm:$0xf]
    %v321 = vld [vmem:[%s306 + $0x38] sm:$0xf]
    %v322 = vld [vmem:[%s306 + $0x3c] sm:$0xf]
    %v323 = vlaneseq
    %v324 = vshrl.u32 %v323, 7
    %v325 = vsub.s32 2, %v324
    %v326 = vrot.slane %v59, %v325
    %v343 = vunpack.c.l.b16 %v307
    %v344 = vunpack.c.l.b16 %v308
    %v345 = vunpack.c.l.b16 %v309
    %v346 = vunpack.c.l.b16 %v310
    %v347 = vunpack.c.l.b16 %v311
    %v348 = vunpack.c.l.b16 %v312
    %v349 = vunpack.c.l.b16 %v313
    %v350 = vunpack.c.l.b16 %v314
    %v351 = vunpack.c.l.b16 %v315
    %v352 = vunpack.c.l.b16 %v316
    %v353 = vunpack.c.l.b16 %v317
    %v354 = vunpack.c.l.b16 %v318
    %v355 = vunpack.c.l.b16 %v319
    %v356 = vunpack.c.l.b16 %v320
    %v357 = vunpack.c.l.b16 %v321
    %v358 = vunpack.c.l.b16 %v322
    %v359 = vpack.c.b16 %v344, %v343
    %v360 = vpack.c.b16 %v346, %v345
    %v361 = vpack.c.b16 %v348, %v347
    %v362 = vpack.c.b16 %v350, %v349
    %v363 = vpack.c.b16 %v352, %v351
    %v364 = vpack.c.b16 %v354, %v353
    %v365 = vpack.c.b16 %v356, %v355
    %v366 = vpack.c.b16 %v358, %v357
    %375 = vmatprep.subr.bf16.mxu0 0
    %376 = vmatpush1.bf16.msra.mxu0 %v359
    %377 = vmatprep.subr.bf16.mxu0 0
    %378 = vmatpush1.bf16.msra.mxu0 %v360
    %379 = vmatprep.subr.bf16.mxu0 0
    %380 = vmatpush1.bf16.msra.mxu0 %v361
    %381 = vmatprep.subr.bf16.mxu0 0
    %382 = vmatpush1.bf16.msra.mxu0 %v362
    %383 = vmatprep.subr.bf16.mxu0 0
    %384 = vmatpush1.bf16.msra.mxu0 %v363
    %385 = vmatprep.subr.bf16.mxu0 0
    %386 = vmatpush1.bf16.msra.mxu0 %v364
    %387 = vmatprep.subr.bf16.mxu0 0
    %388 = vmatpush1.bf16.msra.mxu0 %v365
    %389 = vmatprep.subr.bf16.mxu0 0
    %390 = vmatpush1.bf16.msra.mxu0 %v366
    %391 = vmatprep.subr.bf16.mxu0 0
    %392 = vmatpush1.bf16.msra.mxu0 0
    %393 = vmatprep.subr.bf16.mxu0 0
    %394 = vmatpush1.bf16.msra.mxu0 0
    %395 = vmatprep.subr.bf16.mxu0 0
    %396 = vmatpush1.bf16.msra.mxu0 0
    %397 = vmatprep.subr.bf16.mxu0 0
    %398 = vmatpush1.bf16.msra.mxu0 0
    %399 = vmatprep.subr.bf16.mxu0 0
    %400 = vmatpush1.bf16.msra.mxu0 0
    %401 = vmatprep.subr.bf16.mxu0 0
    %402 = vmatpush1.bf16.msra.mxu0 0
    %403 = vmatprep.subr.bf16.mxu0 0
    %404 = vmatpush1.bf16.msra.mxu0 0
    %405 = vmatprep.subr.bf16.mxu0 0
    %406 = vmatpush1.bf16.msra.mxu0 0
    %407 = vmatprep.mubr.bf16.mxu0 0
    %408 = vmatmul.mubr.bf16.gmra.mrb[0].mxu0 %v305
    %v409 = vpop.f32.mrb[0].mxu0
    %v410 = vadd.f32 %v326, %v409
    %v411 = vpop.f32.mrb[0].mxu0
    %v412 = vpop.f32.mrb[0].mxu0
    %v413 = vpop.f32.mrb[0].mxu0
    %414 = vdwg.mxu0
    %v415 = vmax.f32 %v410, 0.0
    %v416 = vpack.c.bf16 %v415, %v415
    %s417 = scalar_lea.vmem [#allocation7], 128
    %v418 = vld [vmem:[%s417] sm:$0xf]
    %v419 = vld [vmem:[%s417 + $0x4] sm:$0xf]
    %v420 = vld [vmem:[%s417 + $0x8] sm:$0xf]
    %v421 = vld [vmem:[%s417 + $0xc] sm:$0xf]
    %v422 = vld [vmem:[%s417 + $0x10] sm:$0xf]
    %v423 = vld [vmem:[%s417 + $0x14] sm:$0xf]
    %v424 = vld [vmem:[%s417 + $0x18] sm:$0xf]
    %v425 = vld [vmem:[%s417 + $0x1c] sm:$0xf]
    %v426 = vld [vmem:[%s417 + $0x20] sm:$0xf]
    %v427 = vld [vmem:[%s417 + $0x24] sm:$0xf]
    %v428 = vld [vmem:[%s417 + $0x28] sm:$0xf]
    %v429 = vld [vmem:[%s417 + $0x2c] sm:$0xf]
    %v430 = vld [vmem:[%s417 + $0x30] sm:$0xf]
    %v431 = vld [vmem:[%s417 + $0x34] sm:$0xf]
    %v432 = vld [vmem:[%s417 + $0x38] sm:$0xf]
    %v433 = vld [vmem:[%s417 + $0x3c] sm:$0xf]
    %v434 = vlaneseq
    %v435 = vshrl.u32 %v434, 7
    %v436 = vsub.s32 3, %v435
    %v437 = vrot.slane %v59, %v436
    %v454 = vunpack.c.l.b16 %v418
    %v455 = vunpack.c.l.b16 %v419
    %v456 = vunpack.c.l.b16 %v420
    %v457 = vunpack.c.l.b16 %v421
    %v458 = vunpack.c.l.b16 %v422
    %v459 = vunpack.c.l.b16 %v423
    %v460 = vunpack.c.l.b16 %v424
    %v461 = vunpack.c.l.b16 %v425
    %v462 = vunpack.c.l.b16 %v426
    %v463 = vunpack.c.l.b16 %v427
    %v464 = vunpack.c.l.b16 %v428
    %v465 = vunpack.c.l.b16 %v429
    %v466 = vunpack.c.l.b16 %v430
    %v467 = vunpack.c.l.b16 %v431
    %v468 = vunpack.c.l.b16 %v432
    %v469 = vunpack.c.l.b16 %v433
    %v470 = vpack.c.b16 %v455, %v454
    %v471 = vpack.c.b16 %v457, %v456
    %v472 = vpack.c.b16 %v459, %v458
    %v473 = vpack.c.b16 %v461, %v460
    %v474 = vpack.c.b16 %v463, %v462
    %v475 = vpack.c.b16 %v465, %v464
    %v476 = vpack.c.b16 %v467, %v466
    %v477 = vpack.c.b16 %v469, %v468
    %486 = vmatprep.subr.bf16.mxu0 0
    %487 = vmatpush1.bf16.msra.mxu0 %v470
    %488 = vmatprep.subr.bf16.mxu0 0
    %489 = vmatpush1.bf16.msra.mxu0 %v471
    %490 = vmatprep.subr.bf16.mxu0 0
    %491 = vmatpush1.bf16.msra.mxu0 %v472
    %492 = vmatprep.subr.bf16.mxu0 0
    %493 = vmatpush1.bf16.msra.mxu0 %v473
    %494 = vmatprep.subr.bf16.mxu0 0
    %495 = vmatpush1.bf16.msra.mxu0 %v474
    %496 = vmatprep.subr.bf16.mxu0 0
    %497 = vmatpush1.bf16.msra.mxu0 %v475
    %498 = vmatprep.subr.bf16.mxu0 0
    %499 = vmatpush1.bf16.msra.mxu0 %v476
    %500 = vmatprep.subr.bf16.mxu0 0
    %501 = vmatpush1.bf16.msra.mxu0 %v477
    %502 = vmatprep.subr.bf16.mxu0 0
    %503 = vmatpush1.bf16.msra.mxu0 0
    %504 = vmatprep.subr.bf16.mxu0 0
    %505 = vmatpush1.bf16.msra.mxu0 0
    %506 = vmatprep.subr.bf16.mxu0 0
    %507 = vmatpush1.bf16.msra.mxu0 0
    %508 = vmatprep.subr.bf16.mxu0 0
    %509 = vmatpush1.bf16.msra.mxu0 0
    %510 = vmatprep.subr.bf16.mxu0 0
    %511 = vmatpush1.bf16.msra.mxu0 0
    %512 = vmatprep.subr.bf16.mxu0 0
    %513 = vmatpush1.bf16.msra.mxu0 0
    %514 = vmatprep.subr.bf16.mxu0 0
    %515 = vmatpush1.bf16.msra.mxu0 0
    %516 = vmatprep.subr.bf16.mxu0 0
    %517 = vmatpush1.bf16.msra.mxu0 0
    %518 = vmatprep.mubr.bf16.mxu0 0
    %519 = vmatmul.mubr.bf16.gmra.mrb[0].mxu0 %v416
    %v520 = vpop.f32.mrb[0].mxu0
    %v521 = vadd.f32 %v437, %v520
    %v522 = vpop.f32.mrb[0].mxu0
    %v523 = vpop.f32.mrb[0].mxu0
    %v524 = vpop.f32.mrb[0].mxu0
    %525 = vdwg.mxu0
    %526 = vmax.xlane.f32.xlu0 %v521
    %v527 = vpop.xlane.xlu0 %526
    %v528 = vsub.f32 %v521, %v527
    %v529 = vmul.f32 %v528, 1.442695
    %v530 = vpow.pop %v529
    %531 = vadd.xlane.f32.xlu0 %v530
    %v532 = vpop.xlane.xlu0 %531
    %v533 = vrcp.pop %v532
    %v534 = vmul.f32 %v530, %v533
    %vm535 = vcmask 48128
    %536 = vst.msk [vmem:[#allocation8] sm:$0xff] %vm535, %v534
    // Predicated region
    $region30: #{tpu_custom_call.1} parent=1 // pred_check
      _
    $region31: #{tpu_custom_call.1} parent=1 // pred_check_branch
      %538 = sbr.rel (0) target = $region33
    $region32: #{tpu_custom_call.1} parent=1 // pred_region
      %s540 = ssub.s32 128, 128
      %541 = vsyncadd [#allocation4], %s540
      %s543 = sshll.u32 [#allocation8], 4
      %s544 = int_to_ptr.vmem [resolvable:$true] %s543
      %546 = dma.vmem_to_hbm [thread:$0]  %s544, 128, %s4, [#allocation4]
    $region33: #{tpu_custom_call.1} parent=1 // pred_fallthru
      _
    // Predicated region
    $region34: #{tpu_custom_call.1} parent=1 // pred_check
      _
    $region35: #{tpu_custom_call.1} parent=1 // pred_check_branch
      %548 = sbr.rel (0) target = $region37
    $region36: #{tpu_custom_call.1} parent=1 // pred_region
      %549 = dma.done [#allocation4], 128
    $region37: #{tpu_custom_call.1} parent=1 // pred_fallthru
      _
    %550 = vsyncpa [#allocation3], 1
    %551 = vsyncpa [#allocation6], 1
    %552 = vsyncpa [#allocation4], 1

</llo_original>
